<compile_context>
chip_gen: v5e
topology: v5e:2x2
jax: 0.10.0
libtpu: 0.0.40
codegen_flags: <defaults>
</compile_context>

<pallas_src>
import functools

import jax
import jax.numpy as jnp
from jax import lax
from jax.experimental import pallas as pl
from jax.experimental.pallas import tpu as pltpu


def _elu(x):
    # PyTorch F.elu (alpha=1).  Clamp the exp argument so the inactive branch
    # never overflows.
    return jnp.where(x > 0, x, jnp.exp(jnp.minimum(x, 0.0)) - 1.0)


def vgae_kernel(adj_ref, x_ref, w0_ref, wms_ref, noise_ref, out_ref, *, dim_z):
    bf16, f32 = jnp.bfloat16, jnp.float32

    # --- base_gcn: hidden = elu((adj @ X) @ W0) ------------------------------
    ax = jnp.dot(adj_ref[...], x_ref[...], preferred_element_type=f32)
    h1 = jnp.dot(ax.astype(bf16), w0_ref[...], preferred_element_type=f32)
    hidden = _elu(h1)

    # --- fused gcn_mean / gcn_logstd: [mean|logstd] = adj @ (hidden @ [Wm|Ws])
    hms = jnp.dot(hidden.astype(bf16), wms_ref[...], preferred_element_type=f32)
    ms = jnp.dot(adj_ref[...], hms.astype(bf16), preferred_element_type=f32)
    # NOTE: both slices live inside one 128-lane vreg (dim_z=16), so Mosaic
    # emits a couple of masked selects; acceptable per review ("or just accept
    # the cost").  A pltpu.roll-based full-width FMA would remove them if this
    # ever becomes the binding VPU slot.
    mean = ms[:, :dim_z]
    logstd = ms[:, dim_z:]

    # --- reparameterize: Z = noise * exp(logstd) + mean  (f32 VPU/EUP) -------
    z = noise_ref[...] * jnp.exp(logstd) + mean

    # --- decode: A_pred = Z @ Z.T via last-axis contraction (no transpose) ---
    zb = z.astype(bf16)
    a_pred = lax.dot_general(
        zb, zb,
        dimension_numbers=(((1,), (1,)), ((), ())),
        preferred_element_type=f32,
    )
    out_ref[...] = a_pred.astype(out_ref.dtype)


def vgae_forward(adj, x, w0, wm, ws, noise, *, out_dtype=jnp.float32):
    """Batched VGAE forward.

    adj: [B, N, N], x: [B, N, dim_in], noise: [B, N, dim_z];
    w0: [dim_in, dim_h], wm/ws: [dim_h, dim_z] shared across the batch.
    Returns A_pred: [B, N, N] in `out_dtype` (f32 default; pass bf16 to halve
    the N^2 writeback if the downstream loss tolerates it).
    """
    b, n, _ = adj.shape
    dim_in = x.shape[-1]
    dim_h = w0.shape[-1]
    dim_z = wm.shape[-1]

    # Fuse mean / logstd weights -> one adjacency pass with a 2*dim_z RHS.
    w_ms = jnp.concatenate([wm, ws], axis=1)

    # bf16 MXU operands (accumulation stays f32 inside the kernel); also
    # halves the HBM->VMEM traffic for adj / X / weights.  noise stays f32.
    adj_bf = adj.astype(jnp.bfloat16)
    x_bf = x.astype(jnp.bfloat16)
    w0_bf = w0.astype(jnp.bfloat16)
    wms_bf = w_ms.astype(jnp.bfloat16)

    # Advisory cost estimate so XLA can schedule/overlap this overhead-bound
    # call with surrounding ops.
    flops_per_graph = (
        2 * n * n * dim_in            # adj @ X
        + 2 * n * dim_in * dim_h      # (adj @ X) @ W0
        + 2 * n * dim_h * (2 * dim_z) # hidden @ [Wm|Ws]
        + 2 * n * n * (2 * dim_z)     # adj @ hms
        + 2 * n * n * dim_z           # Z @ Z.T
    )
    bytes_per_graph = (
        n * n * 2                                  # adj (bf16)
        + n * dim_in * 2                           # X (bf16)
        + n * dim_z * 4                            # noise (f32)
        + n * n * jnp.dtype(out_dtype).itemsize    # A_pred
    )
    weight_bytes = (dim_in * dim_h + dim_h * 2 * dim_z) * 2
    cost = pl.CostEstimate(
        flops=b * flops_per_graph,
        transcendentals=b * n * (dim_h + dim_z),
        bytes_accessed=b * bytes_per_graph + weight_bytes,
    )

    kernel = functools.partial(vgae_kernel, dim_z=dim_z)
    return pl.pallas_call(
        kernel,
        out_shape=jax.ShapeDtypeStruct((b, n, n), out_dtype),
        grid=(b,),
        in_specs=[
            pl.BlockSpec((None, n, n), lambda i: (i, 0, 0)),        # adj[i]
            pl.BlockSpec((None, n, dim_in), lambda i: (i, 0, 0)),   # X[i]
            pl.BlockSpec((dim_in, dim_h), lambda i: (0, 0)),        # W0 (shared)
            pl.BlockSpec((dim_h, 2 * dim_z), lambda i: (0, 0)),     # [Wm|Ws]
            pl.BlockSpec((None, n, dim_z), lambda i: (i, 0, 0)),    # noise[i]
        ],
        out_specs=pl.BlockSpec((None, n, n), lambda i: (i, 0, 0)),
        compiler_params=pltpu.CompilerParams(
            # Batch axis is embarrassingly parallel -> megacore sharding on v7x.
            dimension_semantics=("parallel",),
        ),
        cost_estimate=cost,
    )(adj_bf, x_bf, w0_bf, wms_bf, noise)


def glorot_init(key, fan_in, fan_out):
    # matches GraphConvSparse.glorot_init: U(-r, r), r = sqrt(6/(in+out))
    r = jnp.sqrt(6.0 / (fan_in + fan_out))
    return jax.random.uniform(
        key, (fan_in, fan_out), dtype=jnp.float32, minval=-r, maxval=r
    )


def vgae_reference_spec(adj, x, w0, wm, ws, noise):
    # Faithful f32 reference of the PyTorch module (original op order),
    # single graph.
    hidden = jax.nn.elu(adj @ (x @ w0))
    mean = adj @ (hidden @ wm)
    logstd = adj @ (hidden @ ws)
    z = noise * jnp.exp(logstd) + mean
    return z @ z.T


def vgae_reference_matched(adj, x, w0, wm, ws, noise):
    # Pure-JAX reference with the SAME numerics as the kernel (bf16 MXU
    # operands, f32 accumulation, reassociated layer 1, fused mean/logstd),
    # single graph.
    bf16, f32 = jnp.bfloat16, jnp.float32
    dim_z = wm.shape[1]
    adj_bf = adj.astype(bf16)
    w_ms = jnp.concatenate([wm, ws], axis=1).astype(bf16)
    ax = jnp.dot(adj_bf, x.astype(bf16), preferred_element_type=f32)
    h1 = jnp.dot(ax.astype(bf16), w0.astype(bf16), preferred_element_type=f32)
    hidden = _elu(h1)
    hms = jnp.dot(hidden.astype(bf16), w_ms, preferred_element_type=f32)
    ms = jnp.dot(adj_bf, hms.astype(bf16), preferred_element_type=f32)
    mean, logstd = ms[:, :dim_z], ms[:, dim_z:]
    z = noise * jnp.exp(logstd) + mean
    zb = z.astype(bf16)
    return lax.dot_general(
        zb, zb,
        dimension_numbers=(((1,), (1,)), ((), ())),
        preferred_element_type=f32,
    )


if __name__ == "__main__":
    # small, module-consistent shapes; B graphs batched onto the grid
    B, N, DIM_IN, DIM_H, DIM_Z = 4, 128, 16, 32, 16

    key = jax.random.PRNGKey(0)
    k_x, k_adj, k_w0, k_wm, k_ws, k_noise = jax.random.split(key, 6)

    x = jax.random.normal(k_x, (B, N, DIM_IN), dtype=jnp.float32)

    # symmetric, row-normalized dense adjacencies (self-loops included)
    a_raw = (jax.random.uniform(k_adj, (B, N, N)) < 0.05).astype(jnp.float32)
    adj = a_raw + jnp.swapaxes(a_raw, -1, -2) + jnp.eye(N, dtype=jnp.float32)[None]
    adj = adj / jnp.maximum(adj.sum(axis=-1, keepdims=True), 1.0)

    w0 = glorot_init(k_w0, DIM_IN, DIM_H)
    wm = glorot_init(k_wm, DIM_H, DIM_Z)
    ws = glorot_init(k_ws, DIM_H, DIM_Z)

    # gaussian noise for the reparameterization trick (torch.randn_like(mean))
    noise = jax.random.normal(k_noise, (B, N, DIM_Z), dtype=jnp.float32)

    a_pred = vgae_forward(adj, x, w0, wm, ws, noise)
    a_pred = jax.block_until_ready(a_pred)
    assert a_pred.shape == (B, N, N)

    # 1) tight check vs. a precision-matched JAX reference (same bf16 casts,
    #    same op order) — validates the kernel's dataflow exactly.
    a_match = jax.vmap(
        vgae_reference_matched, in_axes=(0, 0, None, None, None, 0)
    )(adj, x, w0, wm, ws, noise)
    assert jnp.allclose(a_pred, a_match, atol=1e-2, rtol=1e-2)

    # 2) aggregate sanity check vs. the full-f32 spec reference (bf16 MXU
    #    operands introduce ~1e-2 relative error; Frobenius ratio stays small).
    #    NOTE: adj is cast to bf16, so rows of the normalized adjacency no
    #    longer sum exactly to 1 — deliberate, tested tradeoff.
    a_spec = jax.vmap(
        vgae_reference_spec, in_axes=(0, 0, None, None, None, 0)
    )(adj, x, w0, wm, ws, noise)
    rel = jnp.linalg.norm(a_pred - a_spec) / jnp.linalg.norm(a_spec)
    assert float(rel) < 5e-2, float(rel)

    print("KERNEL_OK")
</pallas_src>

<mosaic_0001>
module attributes {stable_mosaic.version = 11 : i64} {
  func.func @vgae_kernel(%arg0: i32, %arg1: memref<1x128x128xbf16, #tpu.memory_space<vmem>>, %arg2: memref<1x128x16xbf16, #tpu.memory_space<vmem>>, %arg3: memref<16x32xbf16, #tpu.memory_space<vmem>>, %arg4: memref<32x32xbf16, #tpu.memory_space<vmem>>, %arg5: memref<1x128x16xf32, #tpu.memory_space<vmem>>, %arg6: memref<1x128x128xf32, #tpu.memory_space<vmem>>) attributes {dimension_semantics = [#tpu.dimension_semantics<parallel>], iteration_bounds = array<i64: 4>, scalar_prefetch = 0 : i64, scratch_operands = 0 : i64, tpu.core_type = #tpu.core_type<tc>, window_params = [{transform_indices = @transform_0, window_bounds = array<i64: 1, 128, 128>}, {transform_indices = @transform_1, window_bounds = array<i64: 1, 128, 16>}, {pipeline_mode = #tpu.pipeline_mode<synchronous>, transform_indices = @transform_2, window_bounds = array<i64: 16, 32>}, {pipeline_mode = #tpu.pipeline_mode<synchronous>, transform_indices = @transform_3, window_bounds = array<i64: 32, 32>}, {transform_indices = @transform_4, window_bounds = array<i64: 1, 128, 16>}, {transform_indices = @transform_5, window_bounds = array<i64: 1, 128, 128>}]} {
    %c0 = arith.constant 0 : index
    %c0_0 = arith.constant 0 : index
    %c0_1 = arith.constant 0 : index
    %0 = vector.load %arg1[%c0, %c0_0, %c0_1] : memref<1x128x128xbf16, #tpu.memory_space<vmem>>, vector<1x128x128xbf16>
    %1 = vector.shape_cast %0 : vector<1x128x128xbf16> to vector<128x128xbf16>
    %c0_2 = arith.constant 0 : index
    %c0_3 = arith.constant 0 : index
    %c0_4 = arith.constant 0 : index
    %2 = vector.load %arg2[%c0_2, %c0_3, %c0_4] : memref<1x128x16xbf16, #tpu.memory_space<vmem>>, vector<1x128x16xbf16>
    %3 = vector.shape_cast %2 : vector<1x128x16xbf16> to vector<128x16xbf16>
    %cst = arith.constant dense<0.000000e+00> : vector<128x16xf32>
    %4 = tpu.matmul %1, %3, %cst {dimension_numbers = #tpu.dot_dimension_numbers<[1], [0], [0], [1], [0, 0, 1, 1], [], []>} : vector<128x128xbf16>, vector<128x16xbf16>, vector<128x16xf32> -> vector<128x16xf32>
    %5 = arith.truncf %4 : vector<128x16xf32> to vector<128x16xbf16>
    %c0_5 = arith.constant 0 : index
    %c0_6 = arith.constant 0 : index
    %6 = vector.load %arg3[%c0_5, %c0_6] : memref<16x32xbf16, #tpu.memory_space<vmem>>, vector<16x32xbf16>
    %cst_7 = arith.constant dense<0.000000e+00> : vector<128x32xf32>
    %7 = tpu.matmul %5, %6, %cst_7 {dimension_numbers = #tpu.dot_dimension_numbers<[1], [0], [0], [1], [0, 0, 1, 1], [], []>} : vector<128x16xbf16>, vector<16x32xbf16>, vector<128x32xf32> -> vector<128x32xf32>
    %cst_8 = arith.constant 0.000000e+00 : f32
    %8 = vector.broadcast %cst_8 : f32 to vector<128x32xf32>
    %9 = arith.cmpf ogt, %7, %8 : vector<128x32xf32>
    %cst_9 = arith.constant 0.000000e+00 : f32
    %10 = vector.broadcast %cst_9 : f32 to vector<128x32xf32>
    %11 = arith.minimumf %7, %10 : vector<128x32xf32>
    %12 = math.exp %11 : vector<128x32xf32>
    %cst_10 = arith.constant 1.000000e+00 : f32
    %13 = vector.broadcast %cst_10 : f32 to vector<128x32xf32>
    %14 = arith.subf %12, %13 : vector<128x32xf32>
    %15 = arith.select %9, %7, %14 : vector<128x32xi1>, vector<128x32xf32>
    %16 = arith.truncf %15 : vector<128x32xf32> to vector<128x32xbf16>
    %c0_11 = arith.constant 0 : index
    %c0_12 = arith.constant 0 : index
    %17 = vector.load %arg4[%c0_11, %c0_12] : memref<32x32xbf16, #tpu.memory_space<vmem>>, vector<32x32xbf16>
    %cst_13 = arith.constant dense<0.000000e+00> : vector<128x32xf32>
    %18 = tpu.matmul %16, %17, %cst_13 {dimension_numbers = #tpu.dot_dimension_numbers<[1], [0], [0], [1], [0, 0, 1, 1], [], []>} : vector<128x32xbf16>, vector<32x32xbf16>, vector<128x32xf32> -> vector<128x32xf32>
    %c0_14 = arith.constant 0 : index
    %c0_15 = arith.constant 0 : index
    %c0_16 = arith.constant 0 : index
    %19 = vector.load %arg1[%c0_14, %c0_15, %c0_16] : memref<1x128x128xbf16, #tpu.memory_space<vmem>>, vector<1x128x128xbf16>
    %20 = vector.shape_cast %19 : vector<1x128x128xbf16> to vector<128x128xbf16>
    %21 = arith.truncf %18 : vector<128x32xf32> to vector<128x32xbf16>
    %cst_17 = arith.constant dense<0.000000e+00> : vector<128x32xf32>
    %22 = tpu.matmul %20, %21, %cst_17 {dimension_numbers = #tpu.dot_dimension_numbers<[1], [0], [0], [1], [0, 0, 1, 1], [], []>} : vector<128x128xbf16>, vector<128x32xbf16>, vector<128x32xf32> -> vector<128x32xf32>
    %23 = vector.extract_strided_slice %22 {offsets = [0, 0], sizes = [128, 16], strides = [1, 1]} : vector<128x32xf32> to vector<128x16xf32>
    %24 = vector.extract_strided_slice %22 {offsets = [0, 16], sizes = [128, 16], strides = [1, 1]} : vector<128x32xf32> to vector<128x16xf32>
    %c0_18 = arith.constant 0 : index
    %c0_19 = arith.constant 0 : index
    %c0_20 = arith.constant 0 : index
    %25 = vector.load %arg5[%c0_18, %c0_19, %c0_20] : memref<1x128x16xf32, #tpu.memory_space<vmem>>, vector<1x128x16xf32>
    %26 = vector.shape_cast %25 : vector<1x128x16xf32> to vector<128x16xf32>
    %27 = math.exp %24 : vector<128x16xf32>
    %28 = arith.mulf %26, %27 : vector<128x16xf32>
    %29 = arith.addf %28, %23 : vector<128x16xf32>
    %30 = arith.truncf %29 : vector<128x16xf32> to vector<128x16xbf16>
    %cst_21 = arith.constant dense<0.000000e+00> : vector<128x128xf32>
    %31 = tpu.matmul %30, %30, %cst_21 {dimension_numbers = #tpu.dot_dimension_numbers<[1], [1], [0], [0], [0, 0, 1, 0], [], []>} : vector<128x16xbf16>, vector<128x16xbf16>, vector<128x128xf32> -> vector<128x128xf32>
    %c0_22 = arith.constant 0 : index
    %c0_23 = arith.constant 0 : index
    %c0_24 = arith.constant 0 : index
    %32 = vector.load %arg6[%c0_22, %c0_23, %c0_24] : memref<1x128x128xf32, #tpu.memory_space<vmem>>, vector<1x128x128xf32>
    %33 = vector.shape_cast %32 : vector<1x128x128xf32> to vector<128x128xf32>
    %34 = vector.shape_cast %31 : vector<128x128xf32> to vector<1x128x128xf32>
    tpu.vector_store %arg6[%c0_22, %c0_23, %c0_24], %34 {strides = array<i32>} : memref<1x128x128xf32, #tpu.memory_space<vmem>>, vector<1x128x128xf32>,
    return
  }
  func.func @transform_0(%arg0: i32) -> (i32, i32, i32) {
    %c0_i32 = arith.constant 0 : i32
    %c0_i32_0 = arith.constant 0 : i32
    %c0_i32_1 = arith.constant 0 : i32
    return %arg0, %c0_i32, %c0_i32_0 : i32, i32, i32
  }
  func.func @transform_1(%arg0: i32) -> (i32, i32, i32) {
    %c0_i32 = arith.constant 0 : i32
    %c0_i32_0 = arith.constant 0 : i32
    %c0_i32_1 = arith.constant 0 : i32
    return %arg0, %c0_i32, %c0_i32_0 : i32, i32, i32
  }
  func.func @transform_2(%arg0: i32) -> (i32, i32) {
    %c0_i32 = arith.constant 0 : i32
    %c0_i32_0 = arith.constant 0 : i32
    %c0_i32_1 = arith.constant 0 : i32
    return %c0_i32, %c0_i32_0 : i32, i32
  }
  func.func @transform_3(%arg0: i32) -> (i32, i32) {
    %c0_i32 = arith.constant 0 : i32
    %c0_i32_0 = arith.constant 0 : i32
    %c0_i32_1 = arith.constant 0 : i32
    return %c0_i32, %c0_i32_0 : i32, i32
  }
  func.func @transform_4(%arg0: i32) -> (i32, i32, i32) {
    %c0_i32 = arith.constant 0 : i32
    %c0_i32_0 = arith.constant 0 : i32
    %c0_i32_1 = arith.constant 0 : i32
    return %arg0, %c0_i32, %c0_i32_0 : i32, i32, i32
  }
  func.func @transform_5(%arg0: i32) -> (i32, i32, i32) {
    %c0_i32 = arith.constant 0 : i32
    %c0_i32_0 = arith.constant 0 : i32
    %c0_i32_1 = arith.constant 0 : i32
    return %arg0, %c0_i32, %c0_i32_0 : i32, i32, i32
  }
}

</mosaic_0001>

<llo_original>
// kernel: tpu_custom_call.1
$region0: #{tpu_custom_call.1}
  #allocation0 [shape = 'u32[]', space=smem, size = 0x4, offset = 0x4, fixed_abs, tag = 'smem constant byte address 0x4 - core index']
  #allocation1 [shape = 'u32[72,128]{1,0:T(1,128)}', space=vmem, size = 0x9000, scoped, tag = 'internal scratch']
  %s0 = inlined_call_operand.vmem [shape: bf16[4,128,128], index: 0, kind: input, shape index: {}]
  %s1 = inlined_call_operand.vmem [shape: bf16[4,128,16], index: 1, kind: input, shape index: {}]
  %s2 = inlined_call_operand.vmem [shape: bf16[16,32], index: 2, kind: input, shape index: {}]
  %s3 = inlined_call_operand.vmem [shape: bf16[32,32], index: 3, kind: input, shape index: {}]
  %s4 = inlined_call_operand.vmem [shape: f32[4,128,16], index: 4, kind: input, shape index: {}]
  %s5 = inlined_call_operand.hbm [shape: f32[4,128,128], index: 5, kind: output, shape index: {}]
  %s6 = sld [smem:[#allocation0]]
  $region53: #{tpu_custom_call.1} parent=0
    _
  %s8 = ssub.s32 1, %s6
  %s9 = scalar_select 0, %s8, %s6
  $region1: #{tpu_custom_call.1} parent=0
    #allocation2 [shape = 'u8[131072]{0}', space=vmem, size = 0x20000, scoped, tag = 'output window, operand 0']
    #allocation3 [shape = 's32[2]{0}', space=sflag, size = 0x8, scoped, tag = 'scoped memory for tpu_custom_call.1']
    %10 = vsyncpa [#allocation3], 0
    %s11 = scalar_lea.sflag [#allocation3], 1
    %12 = vsyncpa %s11, 0
    loop: start=0, step=1, limit=6
    $region2: #{tpu_custom_call.1} parent=1 // loop_pre_header
      _
    $region3: #{tpu_custom_call.1} parent=1 // loop_header
      %s14 = sphi 0, %s18
      %p15 = scmp.ge.s32.totalorder %s14, 6
      %s24 = sphi 0, %s26
      %s27 = sphi 0, %s24
      %s28 = sphi 0, %s27
      %s44 = sphi 0, %s28
      %s50 = sphi 0, %s52
      %s53 = sphi 0, %s50
      %s54 = sphi 0, %s53
      %s70 = sphi 0, %s54
      %s74 = sphi 0, %s74
      %s76 = sphi 0, %s74
      %s77 = sphi 0, %s76
      %s91 = sphi 0, %s77
      %s95 = sphi 0, %s95
      %s97 = sphi 0, %s95
      %s98 = sphi 0, %s97
      %s112 = sphi 0, %s98
      %s118 = sphi 0, %s120
      %s121 = sphi 0, %s118
      %s122 = sphi 0, %s121
      %s138 = sphi 0, %s122
      %s144 = sphi 0, %s146
      %s147 = sphi 0, %s144
      %s148 = sphi 0, %s147
      %s164 = sphi 0, %s148
    $region4: #{tpu_custom_call.1} parent=1 // loop_header_branch
      %17 = sbr.rel (%p15) target = $region8
    $region5: #{tpu_custom_call.1} parent=1 // loop_body
      %s19 = ssub.s32 %s14, 1
      %s20 = ssub.s32 %s14, 2
      %s21 = sadd.s32 %s14, 1
      %s22 = ssub.s32 %s14, %s21
      %p23 = scmp.eq.s32.totalorder %s22, 0
      %s25 = sadd.s32 %s24, 1
      %s26 = scalar_select %p23, %s24, %s25
      %p29 = pneg %p23
      %p30 = scmp.eq.s32.totalorder %s14, 3
      %p31 = por %p29, %p30
      %p32 = scmp.ne.s32.totalorder %s24, %s27
      %p33 = scmp.eq.s32.totalorder %s14, 0
      %p34 = por %p32, %p33
      %p35 = scmp.ne.s32.totalorder %s24, %s27
      %p36 = scmp.eq.s32.totalorder %s19, 3
      %p37 = por %p35, %p36
      %p38 = scmp.ne.s32.totalorder %s27, %s28
      %p39 = scmp.eq.s32.totalorder %s19, 0
      %p40 = por %p38, %p39
      %p41 = scmp.ne.s32.totalorder %s27, %s28
      %p42 = scmp.eq.s32.totalorder %s20, 3
      %p43 = por %p41, %p42
      %p45 = scmp.ne.s32.totalorder %s28, %s44
      %p46 = scmp.eq.s32.totalorder %s20, 0
      %p47 = por %p45, %p46
      %s48 = ssub.s32 %s14, %s21
      %p49 = scmp.eq.s32.totalorder %s48, 0
      %s51 = sadd.s32 %s50, 1
      %s52 = scalar_select %p49, %s50, %s51
      %p55 = pneg %p49
      %p56 = scmp.eq.s32.totalorder %s14, 3
      %p57 = por %p55, %p56
      %p58 = scmp.ne.s32.totalorder %s50, %s53
      %p59 = scmp.eq.s32.totalorder %s14, 0
      %p60 = por %p58, %p59
      %p61 = scmp.ne.s32.totalorder %s50, %s53
      %p62 = scmp.eq.s32.totalorder %s19, 3
      %p63 = por %p61, %p62
      %p64 = scmp.ne.s32.totalorder %s53, %s54
      %p65 = scmp.eq.s32.totalorder %s19, 0
      %p66 = por %p64, %p65
      %p67 = scmp.ne.s32.totalorder %s53, %s54
      %p68 = scmp.eq.s32.totalorder %s20, 3
      %p69 = por %p67, %p68
      %p71 = scmp.ne.s32.totalorder %s54, %s70
      %p72 = scmp.eq.s32.totalorder %s20, 0
      %p73 = por %p71, %p72
      %s75 = sadd.s32 %s74, 1
      %p78 = scmp.eq.s32.totalorder %s14, 3
      %p79 = scmp.ne.s32.totalorder %s74, %s76
      %p80 = scmp.eq.s32.totalorder %s14, 0
      %p81 = por %p79, %p80
      %p82 = scmp.ne.s32.totalorder %s74, %s76
      %p83 = scmp.eq.s32.totalorder %s19, 3
      %p84 = por %p82, %p83
      %p85 = scmp.ne.s32.totalorder %s76, %s77
      %p86 = scmp.eq.s32.totalorder %s19, 0
      %p87 = por %p85, %p86
      %p88 = scmp.ne.s32.totalorder %s76, %s77
      %p89 = scmp.eq.s32.totalorder %s20, 3
      %p90 = por %p88, %p89
      %p92 = scmp.ne.s32.totalorder %s77, %s91
      %p93 = scmp.eq.s32.totalorder %s20, 0
      %p94 = por %p92, %p93
      %s96 = sadd.s32 %s95, 1
      %p99 = scmp.eq.s32.totalorder %s14, 3
      %p100 = scmp.ne.s32.totalorder %s95, %s97
      %p101 = scmp.eq.s32.totalorder %s14, 0
      %p102 = por %p100, %p101
      %p103 = scmp.ne.s32.totalorder %s95, %s97
      %p104 = scmp.eq.s32.totalorder %s19, 3
      %p105 = por %p103, %p104
      %p106 = scmp.ne.s32.totalorder %s97, %s98
      %p107 = scmp.eq.s32.totalorder %s19, 0
      %p108 = por %p106, %p107
      %p109 = scmp.ne.s32.totalorder %s97, %s98
      %p110 = scmp.eq.s32.totalorder %s20, 3
      %p111 = por %p109, %p110
      %p113 = scmp.ne.s32.totalorder %s98, %s112
      %p114 = scmp.eq.s32.totalorder %s20, 0
      %p115 = por %p113, %p114
      %s116 = ssub.s32 %s14, %s21
      %p117 = scmp.eq.s32.totalorder %s116, 0
      %s119 = sadd.s32 %s118, 1
      %s120 = scalar_select %p117, %s118, %s119
      %p123 = pneg %p117
      %p124 = scmp.eq.s32.totalorder %s14, 3
      %p125 = por %p123, %p124
      %p126 = scmp.ne.s32.totalorder %s118, %s121
      %p127 = scmp.eq.s32.totalorder %s14, 0
      %p128 = por %p126, %p127
      %p129 = scmp.ne.s32.totalorder %s118, %s121
      %p130 = scmp.eq.s32.totalorder %s19, 3
      %p131 = por %p129, %p130
      %p132 = scmp.ne.s32.totalorder %s121, %s122
      %p133 = scmp.eq.s32.totalorder %s19, 0
      %p134 = por %p132, %p133
      %p135 = scmp.ne.s32.totalorder %s121, %s122
      %p136 = scmp.eq.s32.totalorder %s20, 3
      %p137 = por %p135, %p136
      %p139 = scmp.ne.s32.totalorder %s122, %s138
      %p140 = scmp.eq.s32.totalorder %s20, 0
      %p141 = por %p139, %p140
      %s142 = ssub.s32 %s14, %s21
      %p143 = scmp.eq.s32.totalorder %s142, 0
      %s145 = sadd.s32 %s144, 1
      %s146 = scalar_select %p143, %s144, %s145
      %p149 = pneg %p143
      %p150 = scmp.eq.s32.totalorder %s14, 3
      %p151 = por %p149, %p150
      %p152 = scmp.ne.s32.totalorder %s144, %s147
      %p153 = scmp.eq.s32.totalorder %s14, 0
      %p154 = por %p152, %p153
      %p155 = scmp.ne.s32.totalorder %s144, %s147
      %p156 = scmp.eq.s32.totalorder %s19, 3
      %p157 = por %p155, %p156
      %p158 = scmp.ne.s32.totalorder %s147, %s148
      %p159 = scmp.eq.s32.totalorder %s19, 0
      %p160 = por %p158, %p159
      %p161 = scmp.ne.s32.totalorder %s147, %s148
      %p162 = scmp.eq.s32.totalorder %s20, 3
      %p163 = por %p161, %p162
      %p165 = scmp.ne.s32.totalorder %s148, %s164
      %p166 = scmp.eq.s32.totalorder %s20, 0
      %p167 = por %p165, %p166
      %p168 = scmp.le.s32.totalorder 1, %s14
      %p169 = scmp.lt.s32.totalorder %s14, 5
      %p170 = pnand %p168, %p169
      %p171 = pneg %p170
      // Predicated region
      $region9: #{tpu_custom_call.1} parent=5 // pred_check
        _
      $region10: #{tpu_custom_call.1} parent=5 // pred_check_branch
        %173 = sbr.rel (%p170) target = $region12
      $region11: #{tpu_custom_call.1} parent=5 // pred_region
        %s174 = ssub.s32 %s14, 1
        // Predicated region
        $region13: #{tpu_custom_call.1} parent=11 // pred_check
          %p175 = pneg %p87
        $region14: #{tpu_custom_call.1} parent=11 // pred_check_branch
          %177 = sbr.rel (%p175) target = $region16
        $region15: #{tpu_custom_call.1} parent=11 // pred_region
          _
        $region16: #{tpu_custom_call.1} parent=11 // pred_fallthru
          _
        // Predicated region
        $region17: #{tpu_custom_call.1} parent=11 // pred_check
          %p178 = pneg %p108
        $region18: #{tpu_custom_call.1} parent=11 // pred_check_branch
          %180 = sbr.rel (%p178) target = $region20
        $region19: #{tpu_custom_call.1} parent=11 // pred_region
          _
        $region20: #{tpu_custom_call.1} parent=11 // pred_fallthru
          _
      $region12: #{tpu_custom_call.1} parent=5 // pred_fallthru
        _
      %p181 = scmp.lt.s32.totalorder %s14, 4
      // Predicated region
      $region21: #{tpu_custom_call.1} parent=5 // pred_check
        %p182 = pneg %p181
      $region22: #{tpu_custom_call.1} parent=5 // pred_check_branch
        %184 = sbr.rel (%p182) target = $region24
      $region23: #{tpu_custom_call.1} parent=5 // pred_region
        // Predicated region
        $region25: #{tpu_custom_call.1} parent=23 // pred_check
          %p185 = pneg %p34
        $region26: #{tpu_custom_call.1} parent=23 // pred_check_branch
          %187 = sbr.rel (%p185) target = $region28
        $region27: #{tpu_custom_call.1} parent=23 // pred_region
          %p188 = scmp.lt.s32.totalorder %s14, 3
          %s189 = scalar_select %p188, %s14, 3
          %s190 = smul.addr %s189, 16
          %s191 = smul.addr %s190, 4
          %s192 = scalar_lea.vmem %s0, %s191
        $region28: #{tpu_custom_call.1} parent=23 // pred_fallthru
          _
        // Predicated region
        $region29: #{tpu_custom_call.1} parent=23 // pred_check
          %p193 = pneg %p60
        $region30: #{tpu_custom_call.1} parent=23 // pred_check_branch
          %195 = sbr.rel (%p193) target = $region32
        $region31: #{tpu_custom_call.1} parent=23 // pred_region
          %p196 = scmp.lt.s32.totalorder %s14, 3
          %s197 = scalar_select %p196, %s14, 3
          %s198 = smul.addr %s197, 16
          %s199 = smul.addr %s198, 4
          %s200 = scalar_lea.vmem %s1, %s199
        $region32: #{tpu_custom_call.1} parent=23 // pred_fallthru
          _
        // Predicated region
        $region33: #{tpu_custom_call.1} parent=23 // pred_check
          %p201 = pneg %p128
        $region34: #{tpu_custom_call.1} parent=23 // pred_check_branch
          %203 = sbr.rel (%p201) target = $region36
        $region35: #{tpu_custom_call.1} parent=23 // pred_region
          %p204 = scmp.lt.s32.totalorder %s14, 3
          %s205 = scalar_select %p204, %s14, 3
          %s206 = smul.addr %s205, 16
          %s207 = smul.addr %s206, 8
          %s208 = scalar_lea.vmem %s4, %s207
        $region36: #{tpu_custom_call.1} parent=23 // pred_fallthru
          _
      $region24: #{tpu_custom_call.1} parent=5 // pred_fallthru
        _
      %p209 = scmp.le.s32.totalorder 1, %s14
      %p210 = scmp.lt.s32.totalorder %s14, 5
      %p211 = pnand %p209, %p210
      %p212 = pneg %p211
      // Predicated region
      $region37: #{tpu_custom_call.1} parent=5 // pred_check
        _
      $region38: #{tpu_custom_call.1} parent=5 // pred_check_branch
        %214 = sbr.rel (%p211) target = $region40
      $region39: #{tpu_custom_call.1} parent=5 // pred_region
        %s215 = ssub.s32 %s14, 1
        %p216 = scmp.lt.s32.totalorder %s19, 3
        %s217 = scalar_select %p216, %s19, 3
        %s218 = smul.addr %s217, 16
        %s219 = smul.addr %s218, 4
        %s220 = scalar_lea.vmem %s0, %s219
        %p221 = pneg %p40
        %p222 = pneg %p37
        %p223 = scmp.lt.s32.totalorder %s19, 3
        %s224 = scalar_select %p223, %s19, 3
        %s225 = smul.addr %s224, 16
        %s226 = smul.addr %s225, 4
        %s227 = scalar_lea.vmem %s1, %s226
        %p228 = pneg %p66
        %p229 = pneg %p63
        %p230 = pneg %p87
        %p231 = pneg %p84
        %p232 = pneg %p108
        %p233 = pneg %p105
        %p234 = scmp.lt.s32.totalorder %s19, 3
        %s235 = scalar_select %p234, %s19, 3
        %s236 = smul.addr %s235, 16
        %s237 = smul.addr %s236, 8
        %s238 = scalar_lea.vmem %s4, %s237
        %p239 = pneg %p134
        %p240 = pneg %p131
        %p241 = pneg %p160
        %p242 = pneg %p157
        %s243 = sand.u32 %s147, 1
        %s244 = scalar_lea.sflag [#allocation3], %s243
        %s245 = sand.u32 %s147, 1
        %s246 = smul.addr %s245, 128
        %s247 = scalar_lea.vmem [#allocation2], %s246
        %p248 = scmp.lt.s32.totalorder %s19, 3
        %s249 = scalar_select %p248, %s19, 3
        %s250 = smul.addr %s249, 16
        %s251 = smul.addr %s250, 4
        %s252 = scalar_lea.vmem %s0, %s251
        %p253 = scmp.lt.s32.totalorder %s19, 3
        %s254 = scalar_select %p253, %s19, 3
        %s255 = smul.addr %s254, 16
        %s256 = smul.addr %s255, 4
        %s257 = scalar_lea.vmem %s1, %s256
        %p258 = scmp.lt.s32.totalorder %s19, 3
        %s259 = scalar_select %p258, %s19, 3
        %s260 = smul.addr %s259, 16
        %s261 = smul.addr %s260, 8
        %s262 = scalar_lea.vmem %s4, %s261
        %v264 = vld [vmem:[%s252] sm:$0xf]
        %v265 = vld [vmem:[%s252 + $0x4] sm:$0xf]
        %v266 = vld [vmem:[%s252 + $0x8] sm:$0xf]
        %v267 = vld [vmem:[%s252 + $0xc] sm:$0xf]
        %v268 = vld [vmem:[%s252 + $0x10] sm:$0xf]
        %v269 = vld [vmem:[%s252 + $0x14] sm:$0xf]
        %v270 = vld [vmem:[%s252 + $0x18] sm:$0xf]
        %v271 = vld [vmem:[%s252 + $0x1c] sm:$0xf]
        %v272 = vld [vmem:[%s252 + $0x20] sm:$0xf]
        %v273 = vld [vmem:[%s252 + $0x24] sm:$0xf]
        %v274 = vld [vmem:[%s252 + $0x28] sm:$0xf]
        %v275 = vld [vmem:[%s252 + $0x2c] sm:$0xf]
        %v276 = vld [vmem:[%s252 + $0x30] sm:$0xf]
        %v277 = vld [vmem:[%s252 + $0x34] sm:$0xf]
        %v278 = vld [vmem:[%s252 + $0x38] sm:$0xf]
        %v279 = vld [vmem:[%s252 + $0x3c] sm:$0xf]
        %v280 = vld [vmem:[%s257] sm:$0xf]
        %v281 = vld [vmem:[%s257 + $0x4] sm:$0xf]
        %v282 = vld [vmem:[%s257 + $0x8] sm:$0xf]
        %v283 = vld [vmem:[%s257 + $0xc] sm:$0xf]
        %v284 = vld [vmem:[%s257 + $0x10] sm:$0xf]
        %v285 = vld [vmem:[%s257 + $0x14] sm:$0xf]
        %v286 = vld [vmem:[%s257 + $0x18] sm:$0xf]
        %v287 = vld [vmem:[%s257 + $0x1c] sm:$0xf]
        %v288 = vld [vmem:[%s257 + $0x20] sm:$0xf]
        %v289 = vld [vmem:[%s257 + $0x24] sm:$0xf]
        %v290 = vld [vmem:[%s257 + $0x28] sm:$0xf]
        %v291 = vld [vmem:[%s257 + $0x2c] sm:$0xf]
        %v292 = vld [vmem:[%s257 + $0x30] sm:$0xf]
        %v293 = vld [vmem:[%s257 + $0x34] sm:$0xf]
        %v294 = vld [vmem:[%s257 + $0x38] sm:$0xf]
        %v295 = vld [vmem:[%s257 + $0x3c] sm:$0xf]
        %v312 = vunpack.c.l.b16 %v264
        %v313 = vunpack.c.l.b16 %v265
        %v314 = vunpack.c.l.b16 %v266
        %v315 = vunpack.c.l.b16 %v267
        %v316 = vunpack.c.l.b16 %v268
        %v317 = vunpack.c.l.b16 %v269
        %v318 = vunpack.c.l.b16 %v270
        %v319 = vunpack.c.l.b16 %v271
        %v320 = vunpack.c.l.b16 %v272
        %v321 = vunpack.c.l.b16 %v273
        %v322 = vunpack.c.l.b16 %v274
        %v323 = vunpack.c.l.b16 %v275
        %v324 = vunpack.c.l.b16 %v276
        %v325 = vunpack.c.l.b16 %v277
        %v326 = vunpack.c.l.b16 %v278
        %v327 = vunpack.c.l.b16 %v279
        %v328 = vpack.c.b16 %v313, %v312
        %v329 = vpack.c.b16 %v315, %v314
        %v330 = vpack.c.b16 %v317, %v316
        %v331 = vpack.c.b16 %v319, %v318
        %v332 = vpack.c.b16 %v321, %v320
        %v333 = vpack.c.b16 %v323, %v322
        %v334 = vpack.c.b16 %v325, %v324
        %v335 = vpack.c.b16 %v327, %v326
        %v360 = vunpack.c.l.b16 %v280
        %v361 = vunpack.c.l.b16 %v281
        %v362 = vunpack.c.l.b16 %v282
        %v363 = vunpack.c.l.b16 %v283
        %v364 = vunpack.c.l.b16 %v284
        %v365 = vunpack.c.l.b16 %v285
        %v366 = vunpack.c.l.b16 %v286
        %v367 = vunpack.c.l.b16 %v287
        %v368 = vunpack.c.l.b16 %v288
        %v369 = vunpack.c.l.b16 %v289
        %v370 = vunpack.c.l.b16 %v290
        %v371 = vunpack.c.l.b16 %v291
        %v372 = vunpack.c.l.b16 %v292
        %v373 = vunpack.c.l.b16 %v293
        %v374 = vunpack.c.l.b16 %v294
        %v375 = vunpack.c.l.b16 %v295
        %v376 = vpack.c.b16 %v361, %v360
        %v377 = vpack.c.b16 %v363, %v362
        %v378 = vpack.c.b16 %v365, %v364
        %v379 = vpack.c.b16 %v367, %v366
        %v380 = vpack.c.b16 %v369, %v368
        %v381 = vpack.c.b16 %v371, %v370
        %v382 = vpack.c.b16 %v373, %v372
        %v383 = vpack.c.b16 %v375, %v374
        %392 = vmatpush.bf16.msra.mxu0 %v383
        %393 = vmatpush.bf16.msra.mxu0 %v382
        %394 = vmatpush.bf16.msra.mxu0 %v381
        %395 = vmatpush.bf16.msra.mxu0 %v380
        %396 = vmatpush.bf16.msra.mxu0 %v379
        %397 = vmatpush.bf16.msra.mxu0 %v378
        %398 = vmatpush.bf16.msra.mxu0 %v377
        %399 = vmatpush.bf16.msra.mxu0 %v376
        %400 = vmatmul.bf16.gmra.mxu0 %v328
        %v401 = vpop.f32.mrf.mxu0
        %v402 = vadd.f32 0.0, %v401
        %v403 = vpop.f32.mrf.mxu0
        %v404 = vadd.f32 0.0, %v403
        %405 = vmatmul.bf16.gmra.mxu0 %v329
        %v406 = vpop.f32.mrf.mxu0
        %v407 = vadd.f32 0.0, %v406
        %v408 = vpop.f32.mrf.mxu0
        %v409 = vadd.f32 0.0, %v408
        %410 = vmatmul.bf16.gmra.mxu0 %v330
        %v411 = vpop.f32.mrf.mxu0
        %v412 = vadd.f32 0.0, %v411
        %v413 = vpop.f32.mrf.mxu0
        %v414 = vadd.f32 0.0, %v413
        %415 = vmatmul.bf16.gmra.mxu0 %v331
        %v416 = vpop.f32.mrf.mxu0
        %v417 = vadd.f32 0.0, %v416
        %v418 = vpop.f32.mrf.mxu0
        %v419 = vadd.f32 0.0, %v418
        %420 = vmatmul.bf16.gmra.mxu0 %v332
        %v421 = vpop.f32.mrf.mxu0
        %v422 = vadd.f32 0.0, %v421
        %v423 = vpop.f32.mrf.mxu0
        %v424 = vadd.f32 0.0, %v423
        %425 = vmatmul.bf16.gmra.mxu0 %v333
        %v426 = vpop.f32.mrf.mxu0
        %v427 = vadd.f32 0.0, %v426
        %v428 = vpop.f32.mrf.mxu0
        %v429 = vadd.f32 0.0, %v428
        %430 = vmatmul.bf16.gmra.mxu0 %v334
        %v431 = vpop.f32.mrf.mxu0
        %v432 = vadd.f32 0.0, %v431
        %v433 = vpop.f32.mrf.mxu0
        %v434 = vadd.f32 0.0, %v433
        %435 = vmatmul.bf16.gmra.mxu0 %v335
        %v436 = vpop.f32.mrf.mxu0
        %v437 = vadd.f32 0.0, %v436
        %v438 = vpop.f32.mrf.mxu0
        %v439 = vadd.f32 0.0, %v438
        %440 = vdwg.mxu0
        %v441 = vpack.c.bf16 %v404, %v402
        %v442 = vpack.c.bf16 %v409, %v407
        %v443 = vpack.c.bf16 %v414, %v412
        %v444 = vpack.c.bf16 %v419, %v417
        %v445 = vpack.c.bf16 %v424, %v422
        %v446 = vpack.c.bf16 %v429, %v427
        %v447 = vpack.c.bf16 %v434, %v432
        %v448 = vpack.c.bf16 %v439, %v437
        %v449 = vld [vmem:[%s2] sm:$0xf]
        %v450 = vld [vmem:[%s2 + $0x4] sm:$0xf]
        %v453 = vunpack.c.l.b16 %v449
        %v454 = vunpack.c.l.b16 %v450
        %v455 = vpack.c.b16 %v454, %v453
        %vm457 = vcmask 130048
        %v459 = vsel %vm457, %v441, 0
        %v462 = vsel %vm457, %v442, 0
        %v465 = vsel %vm457, %v443, 0
        %v468 = vsel %vm457, %v444, 0
        %v471 = vsel %vm457, %v445, 0
        %v474 = vsel %vm457, %v446, 0
        %v477 = vsel %vm457, %v447, 0
        %v480 = vsel %vm457, %v448, 0
        %482 = vmatpush.bf16.msra.mxu0 0
        %483 = vmatpush.bf16.msra.mxu0 0
        %484 = vmatpush.bf16.msra.mxu0 0
        %485 = vmatpush.bf16.msra.mxu0 0
        %486 = vmatpush.bf16.msra.mxu0 0
        %487 = vmatpush.bf16.msra.mxu0 0
        %488 = vmatpush.bf16.msra.mxu0 0
        %489 = vmatpush.bf16.msra.mxu0 %v455
        %490 = vmatmul.bf16.gmra.mxu0 %v459
        %v491 = vpop.f32.mrf.mxu0
        %v492 = vadd.f32 0.0, %v491
        %v493 = vpop.f32.mrf.mxu0
        %v494 = vadd.f32 0.0, %v493
        %495 = vmatmul.bf16.gmra.mxu0 %v462
        %v496 = vpop.f32.mrf.mxu0
        %v497 = vadd.f32 0.0, %v496
        %v498 = vpop.f32.mrf.mxu0
        %v499 = vadd.f32 0.0, %v498
        %500 = vmatmul.bf16.gmra.mxu0 %v465
        %v501 = vpop.f32.mrf.mxu0
        %v502 = vadd.f32 0.0, %v501
        %v503 = vpop.f32.mrf.mxu0
        %v504 = vadd.f32 0.0, %v503
        %505 = vmatmul.bf16.gmra.mxu0 %v468
        %v506 = vpop.f32.mrf.mxu0
        %v507 = vadd.f32 0.0, %v506
        %v508 = vpop.f32.mrf.mxu0
        %v509 = vadd.f32 0.0, %v508
        %510 = vmatmul.bf16.gmra.mxu0 %v471
        %v511 = vpop.f32.mrf.mxu0
        %v512 = vadd.f32 0.0, %v511
        %v513 = vpop.f32.mrf.mxu0
        %v514 = vadd.f32 0.0, %v513
        %515 = vmatmul.bf16.gmra.mxu0 %v474
        %v516 = vpop.f32.mrf.mxu0
        %v517 = vadd.f32 0.0, %v516
        %v518 = vpop.f32.mrf.mxu0
        %v519 = vadd.f32 0.0, %v518
        %520 = vmatmul.bf16.gmra.mxu0 %v477
        %v521 = vpop.f32.mrf.mxu0
        %v522 = vadd.f32 0.0, %v521
        %v523 = vpop.f32.mrf.mxu0
        %v524 = vadd.f32 0.0, %v523
        %525 = vmatmul.bf16.gmra.mxu0 %v480
        %v526 = vpop.f32.mrf.mxu0
        %v527 = vadd.f32 0.0, %v526
        %v528 = vpop.f32.mrf.mxu0
        %v529 = vadd.f32 0.0, %v528
        %530 = vdwg.mxu0
        %vm531 = vcmp.gt.f32.partialorder %v492, 0.0
        %vm532 = vcmp.gt.f32.partialorder %v494, 0.0
        %vm533 = vcmp.gt.f32.partialorder %v497, 0.0
        %vm534 = vcmp.gt.f32.partialorder %v499, 0.0
        %vm535 = vcmp.gt.f32.partialorder %v502, 0.0
        %vm536 = vcmp.gt.f32.partialorder %v504, 0.0
        %vm537 = vcmp.gt.f32.partialorder %v507, 0.0
        %vm538 = vcmp.gt.f32.partialorder %v509, 0.0
        %vm539 = vcmp.gt.f32.partialorder %v512, 0.0
        %vm540 = vcmp.gt.f32.partialorder %v514, 0.0
        %vm541 = vcmp.gt.f32.partialorder %v517, 0.0
        %vm542 = vcmp.gt.f32.partialorder %v519, 0.0
        %vm543 = vcmp.gt.f32.partialorder %v522, 0.0
        %vm544 = vcmp.gt.f32.partialorder %v524, 0.0
        %vm545 = vcmp.gt.f32.partialorder %v527, 0.0
        %vm546 = vcmp.gt.f32.partialorder %v529, 0.0
        %v547 = vmin.f32 %v492, 0.0
        %v548 = vmin.f32 %v494, 0.0
        %v549 = vmin.f32 %v497, 0.0
        %v550 = vmin.f32 %v499, 0.0
        %v551 = vmin.f32 %v502, 0.0
        %v552 = vmin.f32 %v504, 0.0
        %v553 = vmin.f32 %v507, 0.0
        %v554 = vmin.f32 %v509, 0.0
        %v555 = vmin.f32 %v512, 0.0
        %v556 = vmin.f32 %v514, 0.0
        %v557 = vmin.f32 %v517, 0.0
        %v558 = vmin.f32 %v519, 0.0
        %v559 = vmin.f32 %v522, 0.0
        %v560 = vmin.f32 %v524, 0.0
        %v561 = vmin.f32 %v527, 0.0
        %v562 = vmin.f32 %v529, 0.0
        %v563 = vmul.f32 %v547, 1.442695
        %v564 = vpow.pop %v563
        %v565 = vmul.f32 %v548, 1.442695
        %v566 = vpow.pop %v565
        %v567 = vmul.f32 %v549, 1.442695
        %v568 = vpow.pop %v567
        %v569 = vmul.f32 %v550, 1.442695
        %v570 = vpow.pop %v569
        %v571 = vmul.f32 %v551, 1.442695
        %v572 = vpow.pop %v571
        %v573 = vmul.f32 %v552, 1.442695
        %v574 = vpow.pop %v573
        %v575 = vmul.f32 %v553, 1.442695
        %v576 = vpow.pop %v575
        %v577 = vmul.f32 %v554, 1.442695
        %v578 = vpow.pop %v577
        %v579 = vmul.f32 %v555, 1.442695
        %v580 = vpow.pop %v579
        %v581 = vmul.f32 %v556, 1.442695
        %v582 = vpow.pop %v581
        %v583 = vmul.f32 %v557, 1.442695
        %v584 = vpow.pop %v583
        %v585 = vmul.f32 %v558, 1.442695
        %v586 = vpow.pop %v585
        %v587 = vmul.f32 %v559, 1.442695
        %v588 = vpow.pop %v587
        %v589 = vmul.f32 %v560, 1.442695
        %v590 = vpow.pop %v589
        %v591 = vmul.f32 %v561, 1.442695
        %v592 = vpow.pop %v591
        %v593 = vmul.f32 %v562, 1.442695
        %v594 = vpow.pop %v593
        %v595 = vsub.f32 %v564, 1.0
        %v596 = vsub.f32 %v566, 1.0
        %v597 = vsub.f32 %v568, 1.0
        %v598 = vsub.f32 %v570, 1.0
        %v599 = vsub.f32 %v572, 1.0
        %v600 = vsub.f32 %v574, 1.0
        %v601 = vsub.f32 %v576, 1.0
        %v602 = vsub.f32 %v578, 1.0
        %v603 = vsub.f32 %v580, 1.0
        %v604 = vsub.f32 %v582, 1.0
        %v605 = vsub.f32 %v584, 1.0
        %v606 = vsub.f32 %v586, 1.0
        %v607 = vsub.f32 %v588, 1.0
        %v608 = vsub.f32 %v590, 1.0
        %v609 = vsub.f32 %v592, 1.0
        %v610 = vsub.f32 %v594, 1.0
        %v611 = vsel %vm531, %v492, %v595
        %v612 = vsel %vm532, %v494, %v596
        %v613 = vsel %vm533, %v497, %v597
        %v614 = vsel %vm534, %v499, %v598
        %v615 = vsel %vm535, %v502, %v599
        %v616 = vsel %vm536, %v504, %v600
        %v617 = vsel %vm537, %v507, %v601
        %v618 = vsel %vm538, %v509, %v602
        %v619 = vsel %vm539, %v512, %v603
        %v620 = vsel %vm540, %v514, %v604
        %v621 = vsel %vm541, %v517, %v605
        %v622 = vsel %vm542, %v519, %v606
        %v623 = vsel %vm543, %v522, %v607
        %v624 = vsel %vm544, %v524, %v608
        %v625 = vsel %vm545, %v527, %v609
        %v626 = vsel %vm546, %v529, %v610
        %v627 = vpack.c.bf16 %v612, %v611
        %v628 = vpack.c.bf16 %v614, %v613
        %v629 = vpack.c.bf16 %v616, %v615
        %v630 = vpack.c.bf16 %v618, %v617
        %v631 = vpack.c.bf16 %v620, %v619
        %v632 = vpack.c.bf16 %v622, %v621
        %v633 = vpack.c.bf16 %v624, %v623
        %v634 = vpack.c.bf16 %v626, %v625
        %v635 = vld [vmem:[%s3] sm:$0xf]
        %v636 = vld [vmem:[%s3 + $0x4] sm:$0xf]
        %v637 = vld [vmem:[%s3 + $0x8] sm:$0xf]
        %v638 = vld [vmem:[%s3 + $0xc] sm:$0xf]
        %v643 = vunpack.c.l.b16 %v635
        %v644 = vunpack.c.l.b16 %v636
        %v645 = vunpack.c.l.b16 %v637
        %v646 = vunpack.c.l.b16 %v638
        %v647 = vpack.c.b16 %v644, %v643
        %v648 = vpack.c.b16 %v646, %v645
        %vm651 = vcmask 261120
        %v653 = vsel %vm651, %v627, 0
        %v656 = vsel %vm651, %v628, 0
        %v659 = vsel %vm651, %v629, 0
        %v662 = vsel %vm651, %v630, 0
        %v665 = vsel %vm651, %v631, 0
        %v668 = vsel %vm651, %v632, 0
        %v671 = vsel %vm651, %v633, 0
        %v674 = vsel %vm651, %v634, 0
        %676 = vmatpush.bf16.msra.mxu0 0
        %677 = vmatpush.bf16.msra.mxu0 0
        %678 = vmatpush.bf16.msra.mxu0 0
        %679 = vmatpush.bf16.msra.mxu0 0
        %680 = vmatpush.bf16.msra.mxu0 0
        %681 = vmatpush.bf16.msra.mxu0 0
        %682 = vmatpush.bf16.msra.mxu0 %v648
        %683 = vmatpush.bf16.msra.mxu0 %v647
        %684 = vmatmul.bf16.gmra.mxu0 %v653
        %v685 = vpop.f32.mrf.mxu0
        %v686 = vadd.f32 0.0, %v685
        %v687 = vpop.f32.mrf.mxu0
        %v688 = vadd.f32 0.0, %v687
        %689 = vmatmul.bf16.gmra.mxu0 %v656
        %v690 = vpop.f32.mrf.mxu0
        %v691 = vadd.f32 0.0, %v690
        %v692 = vpop.f32.mrf.mxu0
        %v693 = vadd.f32 0.0, %v692
        %694 = vmatmul.bf16.gmra.mxu0 %v659
        %v695 = vpop.f32.mrf.mxu0
        %v696 = vadd.f32 0.0, %v695
        %v697 = vpop.f32.mrf.mxu0
        %v698 = vadd.f32 0.0, %v697
        %699 = vmatmul.bf16.gmra.mxu0 %v662
        %v700 = vpop.f32.mrf.mxu0
        %v701 = vadd.f32 0.0, %v700
        %v702 = vpop.f32.mrf.mxu0
        %v703 = vadd.f32 0.0, %v702
        %704 = vmatmul.bf16.gmra.mxu0 %v665
        %v705 = vpop.f32.mrf.mxu0
        %v706 = vadd.f32 0.0, %v705
        %v707 = vpop.f32.mrf.mxu0
        %v708 = vadd.f32 0.0, %v707
        %709 = vmatmul.bf16.gmra.mxu0 %v668
        %v710 = vpop.f32.mrf.mxu0
        %v711 = vadd.f32 0.0, %v710
        %v712 = vpop.f32.mrf.mxu0
        %v713 = vadd.f32 0.0, %v712
        %714 = vmatmul.bf16.gmra.mxu0 %v671
        %v715 = vpop.f32.mrf.mxu0
        %v716 = vadd.f32 0.0, %v715
        %v717 = vpop.f32.mrf.mxu0
        %v718 = vadd.f32 0.0, %v717
        %719 = vmatmul.bf16.gmra.mxu0 %v674
        %v720 = vpop.f32.mrf.mxu0
        %v721 = vadd.f32 0.0, %v720
        %v722 = vpop.f32.mrf.mxu0
        %v723 = vadd.f32 0.0, %v722
        %724 = vdwg.mxu0
        %v725 = vpack.c.bf16 %v688, %v686
        %v726 = vpack.c.bf16 %v693, %v691
        %v727 = vpack.c.bf16 %v698, %v696
        %v728 = vpack.c.bf16 %v703, %v701
        %v729 = vpack.c.bf16 %v708, %v706
        %v730 = vpack.c.bf16 %v713, %v711
        %v731 = vpack.c.bf16 %v718, %v716
        %v732 = vpack.c.bf16 %v723, %v721
        %733 = vmatpush.bf16.msra.mxu0 %v732
        %734 = vmatpush.bf16.msra.mxu0 %v731
        %735 = vmatpush.bf16.msra.mxu0 %v730
        %736 = vmatpush.bf16.msra.mxu0 %v729
        %737 = vmatpush.bf16.msra.mxu0 %v728
        %738 = vmatpush.bf16.msra.mxu0 %v727
        %739 = vmatpush.bf16.msra.mxu0 %v726
        %740 = vmatpush.bf16.msra.mxu0 %v725
        %741 = vmatmul.bf16.gmra.mxu0 %v328
        %v742 = vpop.f32.mrf.mxu0
        %v743 = vadd.f32 0.0, %v742
        %v744 = vpop.f32.mrf.mxu0
        %v745 = vadd.f32 0.0, %v744
        %746 = vmatmul.bf16.gmra.mxu0 %v329
        %v747 = vpop.f32.mrf.mxu0
        %v748 = vadd.f32 0.0, %v747
        %v749 = vpop.f32.mrf.mxu0
        %v750 = vadd.f32 0.0, %v749
        %751 = vmatmul.bf16.gmra.mxu0 %v330
        %v752 = vpop.f32.mrf.mxu0
        %v753 = vadd.f32 0.0, %v752
        %v754 = vpop.f32.mrf.mxu0
        %v755 = vadd.f32 0.0, %v754
        %756 = vmatmul.bf16.gmra.mxu0 %v331
        %v757 = vpop.f32.mrf.mxu0
        %v758 = vadd.f32 0.0, %v757
        %v759 = vpop.f32.mrf.mxu0
        %v760 = vadd.f32 0.0, %v759
        %761 = vmatmul.bf16.gmra.mxu0 %v332
        %v762 = vpop.f32.mrf.mxu0
        %v763 = vadd.f32 0.0, %v762
        %v764 = vpop.f32.mrf.mxu0
        %v765 = vadd.f32 0.0, %v764
        %766 = vmatmul.bf16.gmra.mxu0 %v333
        %v767 = vpop.f32.mrf.mxu0
        %v768 = vadd.f32 0.0, %v767
        %v769 = vpop.f32.mrf.mxu0
        %v770 = vadd.f32 0.0, %v769
        %771 = vmatmul.bf16.gmra.mxu0 %v334
        %v772 = vpop.f32.mrf.mxu0
        %v773 = vadd.f32 0.0, %v772
        %v774 = vpop.f32.mrf.mxu0
        %v775 = vadd.f32 0.0, %v774
        %776 = vmatmul.bf16.gmra.mxu0 %v335
        %v777 = vpop.f32.mrf.mxu0
        %v778 = vadd.f32 0.0, %v777
        %v779 = vpop.f32.mrf.mxu0
        %v780 = vadd.f32 0.0, %v779
        %781 = vdwg.mxu0
        %v782 = vld [vmem:[%s262] sm:$0xff]
        %v783 = vld [vmem:[%s262 + $0x8] sm:$0xff]
        %v784 = vld [vmem:[%s262 + $0x10] sm:$0xff]
        %v785 = vld [vmem:[%s262 + $0x18] sm:$0xff]
        %v786 = vld [vmem:[%s262 + $0x20] sm:$0xff]
        %v787 = vld [vmem:[%s262 + $0x28] sm:$0xff]
        %v788 = vld [vmem:[%s262 + $0x30] sm:$0xff]
        %v789 = vld [vmem:[%s262 + $0x38] sm:$0xff]
        %v790 = vld [vmem:[%s262 + $0x40] sm:$0xff]
        %v791 = vld [vmem:[%s262 + $0x48] sm:$0xff]
        %v792 = vld [vmem:[%s262 + $0x50] sm:$0xff]
        %v793 = vld [vmem:[%s262 + $0x58] sm:$0xff]
        %v794 = vld [vmem:[%s262 + $0x60] sm:$0xff]
        %v795 = vld [vmem:[%s262 + $0x68] sm:$0xff]
        %v796 = vld [vmem:[%s262 + $0x70] sm:$0xff]
        %v797 = vld [vmem:[%s262 + $0x78] sm:$0xff]
        %v798 = vmul.f32 %v743, 1.442695
        %v799 = vpow.pop %v798
        %v800 = vmul.f32 %v745, 1.442695
        %v801 = vpow.pop %v800
        %v802 = vmul.f32 %v748, 1.442695
        %v803 = vpow.pop %v802
        %v804 = vmul.f32 %v750, 1.442695
        %v805 = vpow.pop %v804
        %v806 = vmul.f32 %v753, 1.442695
        %v807 = vpow.pop %v806
        %v808 = vmul.f32 %v755, 1.442695
        %v809 = vpow.pop %v808
        %v810 = vmul.f32 %v758, 1.442695
        %v811 = vpow.pop %v810
        %v812 = vmul.f32 %v760, 1.442695
        %v813 = vpow.pop %v812
        %v814 = vmul.f32 %v763, 1.442695
        %v815 = vpow.pop %v814
        %v816 = vmul.f32 %v765, 1.442695
        %v817 = vpow.pop %v816
        %v818 = vmul.f32 %v768, 1.442695
        %v819 = vpow.pop %v818
        %v820 = vmul.f32 %v770, 1.442695
        %v821 = vpow.pop %v820
        %v822 = vmul.f32 %v773, 1.442695
        %v823 = vpow.pop %v822
        %v824 = vmul.f32 %v775, 1.442695
        %v825 = vpow.pop %v824
        %v826 = vmul.f32 %v778, 1.442695
        %v827 = vpow.pop %v826
        %v828 = vmul.f32 %v780, 1.442695
        %v829 = vpow.pop %v828
        %846 = vrot.lane.b32.xlu0 %v799, 112
        %v847 = vpop.permute.xlu0 %846
        %848 = vrot.lane.b32.xlu0 %v801, 112
        %v849 = vpop.permute.xlu0 %848
        %850 = vrot.lane.b32.xlu0 %v803, 112
        %v851 = vpop.permute.xlu0 %850
        %852 = vrot.lane.b32.xlu0 %v805, 112
        %v853 = vpop.permute.xlu0 %852
        %854 = vrot.lane.b32.xlu0 %v807, 112
        %v855 = vpop.permute.xlu0 %854
        %856 = vrot.lane.b32.xlu0 %v809, 112
        %v857 = vpop.permute.xlu0 %856
        %858 = vrot.lane.b32.xlu0 %v811, 112
        %v859 = vpop.permute.xlu0 %858
        %860 = vrot.lane.b32.xlu0 %v813, 112
        %v861 = vpop.permute.xlu0 %860
        %862 = vrot.lane.b32.xlu0 %v815, 112
        %v863 = vpop.permute.xlu0 %862
        %864 = vrot.lane.b32.xlu0 %v817, 112
        %v865 = vpop.permute.xlu0 %864
        %866 = vrot.lane.b32.xlu0 %v819, 112
        %v867 = vpop.permute.xlu0 %866
        %868 = vrot.lane.b32.xlu0 %v821, 112
        %v869 = vpop.permute.xlu0 %868
        %870 = vrot.lane.b32.xlu0 %v823, 112
        %v871 = vpop.permute.xlu0 %870
        %872 = vrot.lane.b32.xlu0 %v825, 112
        %v873 = vpop.permute.xlu0 %872
        %874 = vrot.lane.b32.xlu0 %v827, 112
        %v875 = vpop.permute.xlu0 %874
        %876 = vrot.lane.b32.xlu0 %v829, 112
        %v877 = vpop.permute.xlu0 %876
        %v894 = vmul.f32 %v782, %v847
        %v895 = vmul.f32 %v783, %v849
        %v896 = vmul.f32 %v784, %v851
        %v897 = vmul.f32 %v785, %v853
        %v898 = vmul.f32 %v786, %v855
        %v899 = vmul.f32 %v787, %v857
        %v900 = vmul.f32 %v788, %v859
        %v901 = vmul.f32 %v789, %v861
        %v902 = vmul.f32 %v790, %v863
        %v903 = vmul.f32 %v791, %v865
        %v904 = vmul.f32 %v792, %v867
        %v905 = vmul.f32 %v793, %v869
        %v906 = vmul.f32 %v794, %v871
        %v907 = vmul.f32 %v795, %v873
        %v908 = vmul.f32 %v796, %v875
        %v909 = vmul.f32 %v797, %v877
        %v910 = vadd.f32 %v894, %v743
        %v911 = vadd.f32 %v895, %v745
        %v912 = vadd.f32 %v896, %v748
        %v913 = vadd.f32 %v897, %v750
        %v914 = vadd.f32 %v898, %v753
        %v915 = vadd.f32 %v899, %v755
        %v916 = vadd.f32 %v900, %v758
        %v917 = vadd.f32 %v901, %v760
        %v918 = vadd.f32 %v902, %v763
        %v919 = vadd.f32 %v903, %v765
        %v920 = vadd.f32 %v904, %v768
        %v921 = vadd.f32 %v905, %v770
        %v922 = vadd.f32 %v906, %v773
        %v923 = vadd.f32 %v907, %v775
        %v924 = vadd.f32 %v908, %v778
        %v925 = vadd.f32 %v909, %v780
        %v926 = vpack.c.bf16 %v911, %v910
        %v927 = vpack.c.bf16 %v913, %v912
        %v928 = vpack.c.bf16 %v915, %v914
        %v929 = vpack.c.bf16 %v917, %v916
        %v930 = vpack.c.bf16 %v919, %v918
        %v931 = vpack.c.bf16 %v921, %v920
        %v932 = vpack.c.bf16 %v923, %v922
        %v933 = vpack.c.bf16 %v925, %v924
        %v935 = vsel %vm457, %v926, 0
        %v938 = vsel %vm457, %v927, 0
        %v941 = vsel %vm457, %v928, 0
        %v944 = vsel %vm457, %v929, 0
        %v947 = vsel %vm457, %v930, 0
        %v950 = vsel %vm457, %v931, 0
        %v953 = vsel %vm457, %v932, 0
        %v956 = vsel %vm457, %v933, 0
        %958 = vmatpush.bf16.xpose.msra.mxu0 %v956
        %959 = vmatpush.bf16.xpose.msra.mxu0 %v953
        %960 = vmatpush.bf16.xpose.msra.mxu0 %v950
        %961 = vmatpush.bf16.xpose.msra.mxu0 %v947
        %962 = vmatpush.bf16.xpose.msra.mxu0 %v944
        %963 = vmatpush.bf16.xpose.msra.mxu0 %v941
        %964 = vmatpush.bf16.xpose.msra.mxu0 %v938
        %965 = vmatpush.bf16.xpose.msra.mxu0 %v935
        %966 = vmatmul.bf16.gmra.mxu0 %v935
        %v967 = vpop.f32.mrf.mxu0
        %v968 = vadd.f32 0.0, %v967
        %v969 = vpop.f32.mrf.mxu0
        %v970 = vadd.f32 0.0, %v969
        %971 = vmatmul.bf16.gmra.mxu0 %v938
        %v972 = vpop.f32.mrf.mxu0
        %v973 = vadd.f32 0.0, %v972
        %v974 = vpop.f32.mrf.mxu0
        %v975 = vadd.f32 0.0, %v974
        %976 = vmatmul.bf16.gmra.mxu0 %v941
        %v977 = vpop.f32.mrf.mxu0
        %v978 = vadd.f32 0.0, %v977
        %v979 = vpop.f32.mrf.mxu0
        %v980 = vadd.f32 0.0, %v979
        %981 = vmatmul.bf16.gmra.mxu0 %v944
        %v982 = vpop.f32.mrf.mxu0
        %v983 = vadd.f32 0.0, %v982
        %v984 = vpop.f32.mrf.mxu0
        %v985 = vadd.f32 0.0, %v984
        %986 = vmatmul.bf16.gmra.mxu0 %v947
        %v987 = vpop.f32.mrf.mxu0
        %v988 = vadd.f32 0.0, %v987
        %v989 = vpop.f32.mrf.mxu0
        %v990 = vadd.f32 0.0, %v989
        %991 = vmatmul.bf16.gmra.mxu0 %v950
        %v992 = vpop.f32.mrf.mxu0
        %v993 = vadd.f32 0.0, %v992
        %v994 = vpop.f32.mrf.mxu0
        %v995 = vadd.f32 0.0, %v994
        %996 = vmatmul.bf16.gmra.mxu0 %v953
        %v997 = vpop.f32.mrf.mxu0
        %v998 = vadd.f32 0.0, %v997
        %v999 = vpop.f32.mrf.mxu0
        %v1000 = vadd.f32 0.0, %v999
        %1001 = vmatmul.bf16.gmra.mxu0 %v956
        %v1002 = vpop.f32.mrf.mxu0
        %v1003 = vadd.f32 0.0, %v1002
        %v1004 = vpop.f32.mrf.mxu0
        %v1005 = vadd.f32 0.0, %v1004
        %1006 = vdwg.mxu0
        %1007 = vst [vmem:[%s247] sm:$0xff] %v968
        %1008 = vst [vmem:[%s247 + $0x8] sm:$0xff] %v970
        %1009 = vst [vmem:[%s247 + $0x10] sm:$0xff] %v973
        %1010 = vst [vmem:[%s247 + $0x18] sm:$0xff] %v975
        %1011 = vst [vmem:[%s247 + $0x20] sm:$0xff] %v978
        %1012 = vst [vmem:[%s247 + $0x28] sm:$0xff] %v980
        %1013 = vst [vmem:[%s247 + $0x30] sm:$0xff] %v983
        %1014 = vst [vmem:[%s247 + $0x38] sm:$0xff] %v985
        %1015 = vst [vmem:[%s247 + $0x40] sm:$0xff] %v988
        %1016 = vst [vmem:[%s247 + $0x48] sm:$0xff] %v990
        %1017 = vst [vmem:[%s247 + $0x50] sm:$0xff] %v993
        %1018 = vst [vmem:[%s247 + $0x58] sm:$0xff] %v995
        %1019 = vst [vmem:[%s247 + $0x60] sm:$0xff] %v998
        %1020 = vst [vmem:[%s247 + $0x68] sm:$0xff] %v1000
        %1021 = vst [vmem:[%s247 + $0x70] sm:$0xff] %v1003
        %1022 = vst [vmem:[%s247 + $0x78] sm:$0xff] %v1005
        %s1023 = sand.u32 %s147, 1
        %s1024 = scalar_lea.sflag [#allocation3], %s1023
        %s1025 = sand.u32 %s147, 1
        %s1026 = smul.addr %s1025, 128
        %s1027 = scalar_lea.vmem [#allocation2], %s1026
        // Predicated region
        $region41: #{tpu_custom_call.1} parent=39 // pred_check
          %p1028 = pneg %p157
        $region42: #{tpu_custom_call.1} parent=39 // pred_check_branch
          %1030 = sbr.rel (%p1028) target = $region44
        $region43: #{tpu_custom_call.1} parent=39 // pred_region
          %1032 = vsyncadd %s1024, 0
          %s1033 = smul.addr %s19, 16
          %s1034 = smul.addr %s1033, 8
          %s1035 = scalar_lea.hbm %s5, %s1034
          %s1036 = sshll.u32 %s1027, 4
          %s1037 = int_to_ptr.vmem [resolvable:$true] %s1036
          %s1038 = sshll.u32 %s1035, 4
          %s1039 = int_to_ptr.hbm [resolvable:$true] %s1038
          %1044 = dma.vmem_to_hbm [thread:$0]  %s1037, 2048, %s1039, %s1024, 128, 128, 8
        $region44: #{tpu_custom_call.1} parent=39 // pred_fallthru
          _
      $region40: #{tpu_custom_call.1} parent=5 // pred_fallthru
        _
      %p1045 = scmp.le.s32.totalorder 2, %s14
      // Predicated region
      $region45: #{tpu_custom_call.1} parent=5 // pred_check
        %p1046 = pneg %p1045
      $region46: #{tpu_custom_call.1} parent=5 // pred_check_branch
        %1048 = sbr.rel (%p1046) target = $region48
      $region47: #{tpu_custom_call.1} parent=5 // pred_region
        %s1049 = ssub.s32 %s14, 2
        // Predicated region
        $region49: #{tpu_custom_call.1} parent=47 // pred_check
          %p1050 = pneg %p163
        $region50: #{tpu_custom_call.1} parent=47 // pred_check_branch
          %1052 = sbr.rel (%p1050) target = $region52
        $region51: #{tpu_custom_call.1} parent=47 // pred_region
          %s1053 = sand.u32 %s148, 1
          %s1054 = scalar_lea.sflag [#allocation3], %s1053
          %s1055 = sand.u32 %s148, 1
          %s1056 = smul.addr %s1055, 128
          %s1057 = scalar_lea.vmem [#allocation2], %s1056
          %1059 = dma.done %s1054, 2048
        $region52: #{tpu_custom_call.1} parent=47 // pred_fallthru
          _
      $region48: #{tpu_custom_call.1} parent=5 // pred_fallthru
        _
    $region6: #{tpu_custom_call.1} parent=1 // loop_footer
      %s18 = sadd.s32 1, %s14
    $region7: #{tpu_custom_call.1} parent=1 // loop_footer_branch
      %13 = sbr.rel target = $region3
    $region8: #{tpu_custom_call.1} parent=1 // loop_exit
      _
    %1060 = vsyncpa [#allocation3], 1
    %s1061 = scalar_lea.sflag [#allocation3], 1
    %1062 = vsyncpa %s1061, 1

</llo_original>
